<compile_context>
chip_gen: v6e
topology: v6e:2x2x1
jax: 0.10.0
libtpu: 0.0.40
codegen_flags: <defaults>
</compile_context>

<pallas_src>
import functools
import math

import numpy as np
import jax
import jax.numpy as jnp
from jax.experimental import pallas as pl
from jax.experimental.pallas import tpu as pltpu

SAMPLE_RATE = 16000
MIN_LOW_HZ = 50
MIN_BAND_HZ = 50


def _round_up(x, m):
    return (x + m - 1) // m * m


def _sinc_filters(low_hz_, band_hz_, n_, window_, kernel_size, sample_rate,
                  min_low_hz, min_band_hz):
    """SincConv filter bank exactly as in SincConv.forward (plain JAX).

    Grid invariant and only a few KB, so it is computed once here (hoisted
    out of the Pallas kernel) and DMA'd to VMEM a single time.
    """
    low = min_low_hz / sample_rate + jnp.abs(low_hz_)              # (C, 1)
    high = low + min_band_hz / sample_rate + jnp.abs(band_hz_)     # (C, 1)
    half = (kernel_size - 1) // 2

    def sinc(x):                                    # mirrors SincConv.sinc
        x_left = x[:, :half]
        y_left = jnp.sin(x_left) / x_left
        ones = jnp.ones((x.shape[0], 1), x.dtype)
        return jnp.concatenate([y_left, ones, y_left[:, ::-1]], axis=1)

    low_pass1 = 2.0 * low * sinc(2.0 * math.pi * (low * n_) * sample_rate)
    low_pass2 = 2.0 * high * sinc(2.0 * math.pi * (high * n_) * sample_rate)
    band_pass = low_pass2 - low_pass1
    band_pass = band_pass / jnp.max(band_pass, axis=1, keepdims=True)
    return band_pass * window_                                     # (C, K)


def _sinc_conv_kernel(w_ref, xc_ref, xn_ref, o_ref, xs_ref, *, K_pad, tile_t):
    """One (batch item, time tile): o = filters @ im2col(x) on the MXU.

    w_ref  : (C_pad, K_pad)   precomputed filter bank (pad rows/cols are zero)
    xc_ref : (1, tile_t)      input samples of time tile j
    xn_ref : (1, K_ext)       first K_ext samples of tile j+1 (the overlap)
    o_ref  : (C_pad, tile_t)
    xs_ref : (K_pad, tile_t)  VMEM scratch: im2col (shifted-window) matrix
    """
    # Overlapping window assembled from two adjacent, non-overlapping blocks
    # (no dynamic / unaligned VMEM accesses anywhere below).
    x = jnp.concatenate([xc_ref[...], xn_ref[...]], axis=1)  # (1, tile_t+K_ext)

    # im2col: row k of xs is x[k : k + tile_t].  Rows are written in groups
    # of 8 sublanes so every scratch store is full-width / unmasked; rows
    # >= K only ever multiply zero filter columns, so their contents are
    # harmless.
    for k0 in range(0, K_pad, 8):
        group = jnp.concatenate(
            [x[:, k0 + r:k0 + r + tile_t] for r in range(8)], axis=0)
        xs_ref[k0:k0 + 8, :] = group

    # Tap contraction on the MXU (f32 in, f32 accumulate) — frees the VALU.
    o_ref[...] = jnp.dot(w_ref[...], xs_ref[...],
                         preferred_element_type=jnp.float32)


def sinc_conv(waveforms, low_hz_, band_hz_, n_, window_, kernel_size, *,
              sample_rate=SAMPLE_RATE, min_low_hz=MIN_LOW_HZ,
              min_band_hz=MIN_BAND_HZ, tile_t=2048):
    """SincConv.forward: (B, 1, T_in) -> (B, C, T_in - K + 1)."""
    B, c_in, T_in = waveforms.shape
    assert c_in == 1, "SincConv only supports one input channel"
    K = int(kernel_size)
    assert K % 2 == 1, "SincConv forces an odd kernel size"
    C = low_hz_.shape[0]
    T_out = T_in - K + 1
    assert T_out > 0

    C_pad = _round_up(C, 8)
    K_pad = _round_up(K, 8)            # matmul contraction depth
    K_ext = _round_up(K_pad, 128)      # lane-aligned width of next-tile peek

    # Time tile: multiple of K_ext (so the peek block's index_map is exact),
    # lane-dense for unmasked output stores, no larger than needed.
    tile_t = max(min(tile_t, _round_up(T_out, K_ext)), K_ext)
    tile_t = _round_up(tile_t, K_ext)
    nt = pl.cdiv(T_out, tile_t)
    if B * nt < 2:                     # keep both v7x TensorCores fed at B=1
        half_t = _round_up(pl.cdiv(T_out, 2), K_ext)
        if K_ext <= half_t < tile_t:
            tile_t, nt = half_t, pl.cdiv(T_out, half_t)

    f32 = jnp.float32

    # Filter bank hoisted out of the kernel; zero-pad to (C_pad, K_pad) so
    # padded taps / channels contribute nothing.
    filt = _sinc_filters(low_hz_.astype(f32), band_hz_.astype(f32),
                         n_.astype(f32), window_.astype(f32), K,
                         sample_rate, min_low_hz, min_band_hz)
    w_p = jnp.zeros((C_pad, K_pad), f32).at[:C, :K].set(filt)
    # TODO(synk): optional bf16 cast of w / x (f32 accumulation) on v6e/v7x
    # for more MXU throughput once the accuracy budget allows.

    # Zero-pad time so the K_ext peek into tile j+1 always exists; padded
    # samples only feed output columns >= T_out, which Pallas clips away.
    T_x = nt * tile_t + K_ext
    x_p = jnp.zeros((B, 1, T_x), f32).at[:, :, :T_in].set(waveforms.astype(f32))

    kernel = functools.partial(_sinc_conv_kernel, K_pad=K_pad, tile_t=tile_t)
    bpt = tile_t // K_ext              # K_ext-sized blocks per time tile

    out = pl.pallas_call(
        kernel,
        out_shape=jax.ShapeDtypeStruct((B, C_pad, T_out), f32),
        grid=(B, nt),
        in_specs=[
            pl.BlockSpec((C_pad, K_pad), lambda b, j: (0, 0)),
            pl.BlockSpec((pl.Squeezed(), 1, tile_t), lambda b, j: (b, 0, j)),
            pl.BlockSpec((pl.Squeezed(), 1, K_ext),
                         lambda b, j: (b, 0, (j + 1) * bpt)),
        ],
        out_specs=pl.BlockSpec((pl.Squeezed(), C_pad, tile_t),
                               lambda b, j: (b, 0, j)),
        scratch_shapes=[pltpu.VMEM((K_pad, tile_t), f32)],
        compiler_params=pltpu.CompilerParams(
            dimension_semantics=("parallel", "parallel"),
            vmem_limit_bytes=32 * 1024 * 1024,
        ),
        cost_estimate=pl.CostEstimate(
            flops=2 * B * nt * C_pad * K_pad * tile_t,
            transcendentals=0,
            bytes_accessed=4 * (B * nt * (tile_t + K_ext)     # waveform reads
                                + B * C_pad * T_out           # output writes
                                + C_pad * K_pad),             # filters, once
        ),
    )(w_p, x_p, x_p)

    # TODO(synk): only the module's default stride=1 / padding=0 / dilation=1
    # conv1d path is implemented.
    return out if C_pad == C else out[:, :C, :]


if __name__ == "__main__":
    B, C_out, K, T_in = 2, 16, 31, 256   # kernel_size odd (module forces odd)

    key = jax.random.PRNGKey(0)
    waveforms = jax.random.normal(key, (B, 1, T_in), dtype=jnp.float32)

    # Deterministic parameter init, exactly as in SincConv.__init__.
    low_hz0 = 30.0
    high_hz0 = SAMPLE_RATE / 2 - (MIN_LOW_HZ + MIN_BAND_HZ)
    to_mel = lambda hz: 2595.0 * np.log10(1.0 + hz / 700.0)
    to_hz = lambda mel: 700.0 * (10.0 ** (mel / 2595.0) - 1.0)
    mel = np.linspace(to_mel(low_hz0), to_mel(high_hz0), C_out + 1)
    hz = to_hz(mel) / SAMPLE_RATE
    low_np = hz[:-1].reshape(-1, 1)                       # (C, 1)
    band_np = np.diff(hz).reshape(-1, 1)                  # (C, 1)

    n_lin = np.linspace(0.0, K, K)                        # torch.linspace(0, K, K)
    win_np = (0.54 - 0.46 * np.cos(2.0 * math.pi * n_lin / K)).reshape(1, K)
    n_half = (K - 1) / 2
    n_np = (np.arange(-n_half, n_half + 1) / SAMPLE_RATE).reshape(1, K)

    out = sinc_conv(
        waveforms,
        jnp.asarray(low_np, jnp.float32),
        jnp.asarray(band_np, jnp.float32),
        jnp.asarray(n_np, jnp.float32),
        jnp.asarray(win_np, jnp.float32),
        K,
    )
    out = jax.block_until_ready(out)
    assert out.shape == (B, C_out, T_in - K + 1)

    # --- reference: filter bank per the exact torch formula (numpy, f64) -----
    low = MIN_LOW_HZ / SAMPLE_RATE + np.abs(low_np)
    high = low + MIN_BAND_HZ / SAMPLE_RATE + np.abs(band_np)

    def torch_sinc(x):                                    # mirrors SincConv.sinc
        half = int((x.shape[1] - 1) / 2)
        x_left = x[:, :half]
        y_left = np.sin(x_left) / x_left
        y_right = y_left[:, ::-1]
        return np.concatenate([y_left, np.ones((x.shape[0], 1)), y_right], axis=1)

    lp1 = 2.0 * low * torch_sinc(2.0 * math.pi * (low @ n_np) * SAMPLE_RATE)
    lp2 = 2.0 * high * torch_sinc(2.0 * math.pi * (high @ n_np) * SAMPLE_RATE)
    bp = lp2 - lp1
    bp = bp / bp.max(axis=1, keepdims=True)
    filt_ref = (bp * win_np).astype(np.float32)           # (C, K)

    ref = jax.lax.conv_general_dilated(
        waveforms, jnp.asarray(filt_ref)[:, None, :],
        window_strides=(1,), padding="VALID",
        dimension_numbers=("NCH", "OIH", "NCH"),
        precision=jax.lax.Precision.HIGHEST,
    )
    np.testing.assert_allclose(np.asarray(out), np.asarray(ref),
                               rtol=2e-3, atol=2e-3)
    print("KERNEL_OK")
</pallas_src>

<mosaic_0001>
module attributes {stable_mosaic.version = 11 : i64} {
  func.func @_sinc_conv_kernel(%arg0: i32, %arg1: i32, %arg2: memref<16x32xf32, #tpu.memory_space<vmem>>, %arg3: memref<1x1x256xf32, #tpu.memory_space<vmem>>, %arg4: memref<1x1x128xf32, #tpu.memory_space<vmem>>, %arg5: memref<1x16x256xf32, #tpu.memory_space<vmem>>, %arg6: memref<32x256xf32, #tpu.memory_space<vmem>>) attributes {dimension_semantics = [#tpu.dimension_semantics<parallel>, #tpu.dimension_semantics<parallel>], iteration_bounds = array<i64: 2, 1>, scalar_prefetch = 0 : i64, scratch_operands = 1 : i64, tpu.core_type = #tpu.core_type<tc>, window_params = [{pipeline_mode = #tpu.pipeline_mode<synchronous>, transform_indices = @transform_0, window_bounds = array<i64: 16, 32>}, {transform_indices = @transform_1, window_bounds = array<i64: 1, 1, 256>}, {transform_indices = @transform_2, window_bounds = array<i64: 1, 1, 128>}, {transform_indices = @transform_3, window_bounds = array<i64: 1, 16, 256>}]} {
    %c0 = arith.constant 0 : index
    %c0_0 = arith.constant 0 : index
    %c0_1 = arith.constant 0 : index
    %0 = vector.load %arg3[%c0, %c0_0, %c0_1] : memref<1x1x256xf32, #tpu.memory_space<vmem>>, vector<1x1x256xf32>
    %1 = vector.shape_cast %0 : vector<1x1x256xf32> to vector<1x256xf32>
    %c0_2 = arith.constant 0 : index
    %c0_3 = arith.constant 0 : index
    %c0_4 = arith.constant 0 : index
    %2 = vector.load %arg4[%c0_2, %c0_3, %c0_4] : memref<1x1x128xf32, #tpu.memory_space<vmem>>, vector<1x1x128xf32>
    %3 = vector.shape_cast %2 : vector<1x1x128xf32> to vector<1x128xf32>
    %4 = tpu.concatenate %1, %3 in 1 : vector<1x256xf32>, vector<1x128xf32> -> vector<1x384xf32>
    %5 = vector.extract_strided_slice %4 {offsets = [0, 0], sizes = [1, 256], strides = [1, 1]} : vector<1x384xf32> to vector<1x256xf32>
    %6 = vector.extract_strided_slice %4 {offsets = [0, 1], sizes = [1, 256], strides = [1, 1]} : vector<1x384xf32> to vector<1x256xf32>
    %7 = vector.extract_strided_slice %4 {offsets = [0, 2], sizes = [1, 256], strides = [1, 1]} : vector<1x384xf32> to vector<1x256xf32>
    %8 = vector.extract_strided_slice %4 {offsets = [0, 3], sizes = [1, 256], strides = [1, 1]} : vector<1x384xf32> to vector<1x256xf32>
    %9 = vector.extract_strided_slice %4 {offsets = [0, 4], sizes = [1, 256], strides = [1, 1]} : vector<1x384xf32> to vector<1x256xf32>
    %10 = vector.extract_strided_slice %4 {offsets = [0, 5], sizes = [1, 256], strides = [1, 1]} : vector<1x384xf32> to vector<1x256xf32>
    %11 = vector.extract_strided_slice %4 {offsets = [0, 6], sizes = [1, 256], strides = [1, 1]} : vector<1x384xf32> to vector<1x256xf32>
    %12 = vector.extract_strided_slice %4 {offsets = [0, 7], sizes = [1, 256], strides = [1, 1]} : vector<1x384xf32> to vector<1x256xf32>
    %13 = tpu.concatenate %5, %6, %7, %8, %9, %10, %11, %12 in 0 : vector<1x256xf32>, vector<1x256xf32>, vector<1x256xf32>, vector<1x256xf32>, vector<1x256xf32>, vector<1x256xf32>, vector<1x256xf32>, vector<1x256xf32> -> vector<8x256xf32>
    %c0_5 = arith.constant 0 : index
    %c0_6 = arith.constant 0 : index
    %14 = vector.load %arg6[%c0_5, %c0_6] : memref<32x256xf32, #tpu.memory_space<vmem>>, vector<8x256xf32>
    tpu.vector_store %arg6[%c0_5, %c0_6], %13 {strides = array<i32>} : memref<32x256xf32, #tpu.memory_space<vmem>>, vector<8x256xf32>,
    %15 = vector.extract_strided_slice %4 {offsets = [0, 8], sizes = [1, 256], strides = [1, 1]} : vector<1x384xf32> to vector<1x256xf32>
    %16 = vector.extract_strided_slice %4 {offsets = [0, 9], sizes = [1, 256], strides = [1, 1]} : vector<1x384xf32> to vector<1x256xf32>
    %17 = vector.extract_strided_slice %4 {offsets = [0, 10], sizes = [1, 256], strides = [1, 1]} : vector<1x384xf32> to vector<1x256xf32>
    %18 = vector.extract_strided_slice %4 {offsets = [0, 11], sizes = [1, 256], strides = [1, 1]} : vector<1x384xf32> to vector<1x256xf32>
    %19 = vector.extract_strided_slice %4 {offsets = [0, 12], sizes = [1, 256], strides = [1, 1]} : vector<1x384xf32> to vector<1x256xf32>
    %20 = vector.extract_strided_slice %4 {offsets = [0, 13], sizes = [1, 256], strides = [1, 1]} : vector<1x384xf32> to vector<1x256xf32>
    %21 = vector.extract_strided_slice %4 {offsets = [0, 14], sizes = [1, 256], strides = [1, 1]} : vector<1x384xf32> to vector<1x256xf32>
    %22 = vector.extract_strided_slice %4 {offsets = [0, 15], sizes = [1, 256], strides = [1, 1]} : vector<1x384xf32> to vector<1x256xf32>
    %23 = tpu.concatenate %15, %16, %17, %18, %19, %20, %21, %22 in 0 : vector<1x256xf32>, vector<1x256xf32>, vector<1x256xf32>, vector<1x256xf32>, vector<1x256xf32>, vector<1x256xf32>, vector<1x256xf32>, vector<1x256xf32> -> vector<8x256xf32>
    %c8 = arith.constant 8 : index
    %c0_7 = arith.constant 0 : index
    %24 = vector.load %arg6[%c8, %c0_7] : memref<32x256xf32, #tpu.memory_space<vmem>>, vector<8x256xf32>
    tpu.vector_store %arg6[%c8, %c0_7], %23 {strides = array<i32>} : memref<32x256xf32, #tpu.memory_space<vmem>>, vector<8x256xf32>,
    %25 = vector.extract_strided_slice %4 {offsets = [0, 16], sizes = [1, 256], strides = [1, 1]} : vector<1x384xf32> to vector<1x256xf32>
    %26 = vector.extract_strided_slice %4 {offsets = [0, 17], sizes = [1, 256], strides = [1, 1]} : vector<1x384xf32> to vector<1x256xf32>
    %27 = vector.extract_strided_slice %4 {offsets = [0, 18], sizes = [1, 256], strides = [1, 1]} : vector<1x384xf32> to vector<1x256xf32>
    %28 = vector.extract_strided_slice %4 {offsets = [0, 19], sizes = [1, 256], strides = [1, 1]} : vector<1x384xf32> to vector<1x256xf32>
    %29 = vector.extract_strided_slice %4 {offsets = [0, 20], sizes = [1, 256], strides = [1, 1]} : vector<1x384xf32> to vector<1x256xf32>
    %30 = vector.extract_strided_slice %4 {offsets = [0, 21], sizes = [1, 256], strides = [1, 1]} : vector<1x384xf32> to vector<1x256xf32>
    %31 = vector.extract_strided_slice %4 {offsets = [0, 22], sizes = [1, 256], strides = [1, 1]} : vector<1x384xf32> to vector<1x256xf32>
    %32 = vector.extract_strided_slice %4 {offsets = [0, 23], sizes = [1, 256], strides = [1, 1]} : vector<1x384xf32> to vector<1x256xf32>
    %33 = tpu.concatenate %25, %26, %27, %28, %29, %30, %31, %32 in 0 : vector<1x256xf32>, vector<1x256xf32>, vector<1x256xf32>, vector<1x256xf32>, vector<1x256xf32>, vector<1x256xf32>, vector<1x256xf32>, vector<1x256xf32> -> vector<8x256xf32>
    %c16 = arith.constant 16 : index
    %c0_8 = arith.constant 0 : index
    %34 = vector.load %arg6[%c16, %c0_8] : memref<32x256xf32, #tpu.memory_space<vmem>>, vector<8x256xf32>
    tpu.vector_store %arg6[%c16, %c0_8], %33 {strides = array<i32>} : memref<32x256xf32, #tpu.memory_space<vmem>>, vector<8x256xf32>,
    %35 = vector.extract_strided_slice %4 {offsets = [0, 24], sizes = [1, 256], strides = [1, 1]} : vector<1x384xf32> to vector<1x256xf32>
    %36 = vector.extract_strided_slice %4 {offsets = [0, 25], sizes = [1, 256], strides = [1, 1]} : vector<1x384xf32> to vector<1x256xf32>
    %37 = vector.extract_strided_slice %4 {offsets = [0, 26], sizes = [1, 256], strides = [1, 1]} : vector<1x384xf32> to vector<1x256xf32>
    %38 = vector.extract_strided_slice %4 {offsets = [0, 27], sizes = [1, 256], strides = [1, 1]} : vector<1x384xf32> to vector<1x256xf32>
    %39 = vector.extract_strided_slice %4 {offsets = [0, 28], sizes = [1, 256], strides = [1, 1]} : vector<1x384xf32> to vector<1x256xf32>
    %40 = vector.extract_strided_slice %4 {offsets = [0, 29], sizes = [1, 256], strides = [1, 1]} : vector<1x384xf32> to vector<1x256xf32>
    %41 = vector.extract_strided_slice %4 {offsets = [0, 30], sizes = [1, 256], strides = [1, 1]} : vector<1x384xf32> to vector<1x256xf32>
    %42 = vector.extract_strided_slice %4 {offsets = [0, 31], sizes = [1, 256], strides = [1, 1]} : vector<1x384xf32> to vector<1x256xf32>
    %43 = tpu.concatenate %35, %36, %37, %38, %39, %40, %41, %42 in 0 : vector<1x256xf32>, vector<1x256xf32>, vector<1x256xf32>, vector<1x256xf32>, vector<1x256xf32>, vector<1x256xf32>, vector<1x256xf32>, vector<1x256xf32> -> vector<8x256xf32>
    %c24 = arith.constant 24 : index
    %c0_9 = arith.constant 0 : index
    %44 = vector.load %arg6[%c24, %c0_9] : memref<32x256xf32, #tpu.memory_space<vmem>>, vector<8x256xf32>
    tpu.vector_store %arg6[%c24, %c0_9], %43 {strides = array<i32>} : memref<32x256xf32, #tpu.memory_space<vmem>>, vector<8x256xf32>,
    %c0_10 = arith.constant 0 : index
    %c0_11 = arith.constant 0 : index
    %45 = vector.load %arg2[%c0_10, %c0_11] : memref<16x32xf32, #tpu.memory_space<vmem>>, vector<16x32xf32>
    %c0_12 = arith.constant 0 : index
    %c0_13 = arith.constant 0 : index
    %46 = vector.load %arg6[%c0_12, %c0_13] : memref<32x256xf32, #tpu.memory_space<vmem>>, vector<32x256xf32>
    %cst = arith.constant dense<0.000000e+00> : vector<16x256xf32>
    %47 = tpu.matmul %45, %46, %cst {dimension_numbers = #tpu.dot_dimension_numbers<[1], [0], [0], [1], [0, 0, 1, 1], [], []>} : vector<16x32xf32>, vector<32x256xf32>, vector<16x256xf32> -> vector<16x256xf32>
    %c0_14 = arith.constant 0 : index
    %c0_15 = arith.constant 0 : index
    %c0_16 = arith.constant 0 : index
    %48 = vector.load %arg5[%c0_14, %c0_15, %c0_16] : memref<1x16x256xf32, #tpu.memory_space<vmem>>, vector<1x16x256xf32>
    %49 = vector.shape_cast %48 : vector<1x16x256xf32> to vector<16x256xf32>
    %50 = vector.shape_cast %47 : vector<16x256xf32> to vector<1x16x256xf32>
    tpu.vector_store %arg5[%c0_14, %c0_15, %c0_16], %50 {strides = array<i32>} : memref<1x16x256xf32, #tpu.memory_space<vmem>>, vector<1x16x256xf32>,
    return
  }
  func.func @transform_0(%arg0: i32, %arg1: i32) -> (i32, i32) {
    %c0_i32 = arith.constant 0 : i32
    %c0_i32_0 = arith.constant 0 : i32
    %c0_i32_1 = arith.constant 0 : i32
    return %c0_i32, %c0_i32_0 : i32, i32
  }
  func.func @transform_1(%arg0: i32, %arg1: i32) -> (i32, i32, i32) {
    %c0_i32 = arith.constant 0 : i32
    %c0_i32_0 = arith.constant 0 : i32
    return %arg0, %c0_i32, %arg1 : i32, i32, i32
  }
  func.func @transform_2(%arg0: i32, %arg1: i32) -> (i32, i32, i32) {
    %c1_i32 = arith.constant 1 : i32
    %0 = arith.addi %arg1, %c1_i32 : i32
    %c2_i32 = arith.constant 2 : i32
    %1 = arith.muli %0, %c2_i32 : i32
    %c0_i32 = arith.constant 0 : i32
    %c0_i32_0 = arith.constant 0 : i32
    return %arg0, %c0_i32, %1 : i32, i32, i32
  }
  func.func @transform_3(%arg0: i32, %arg1: i32) -> (i32, i32, i32) {
    %c0_i32 = arith.constant 0 : i32
    %c0_i32_0 = arith.constant 0 : i32
    return %arg0, %c0_i32, %arg1 : i32, i32, i32
  }
}

</mosaic_0001>

<llo_original>
// kernel: tpu_custom_call.1
$region0: #{tpu_custom_call.1}
  #allocation0 [shape = 'u32[]', space=smem, size = 0x4, offset = 0x4, fixed_abs, tag = 'smem constant byte address 0x4 - core index']
  #allocation1 [shape = 'u32[144,128]{1,0:T(1,128)}', space=vmem, size = 0x12000, scoped, tag = 'internal scratch']
  #allocation2 [shape = 'f32[32,256]{1,0:T(8,128)}', space=vmem, size = 0x8000, scoped, tag = 'scratch operand']
  %s0 = inlined_call_operand.hbm [shape: f32[16,32], index: 0, kind: input, shape index: {}]
  %s1 = inlined_call_operand.hbm [shape: f32[2,1,384], index: 1, kind: input, shape index: {}]
  %s2 = inlined_call_operand.hbm [shape: f32[2,1,384], index: 2, kind: input, shape index: {}]
  %s3 = inlined_call_operand.hbm [shape: f32[2,16,226], index: 3, kind: output, shape index: {}]
  %s4 = sld [smem:[#allocation0]]
  $region57: #{tpu_custom_call.1} parent=0
    _
  %s6 = ssub.s32 1, %s4
  %s7 = scalar_select 0, %s6, %s4
  $region1: #{tpu_custom_call.1} parent=0
    #allocation3 [shape = 'u8[8192]{0}', space=vmem, size = 0x2000, scoped, tag = 'input window, operand 0, single buffered']
    #allocation4 [shape = 's32[2]{0}', space=sflag, size = 0x8, scoped, tag = 'scoped memory for tpu_custom_call.1']
    #allocation5 [shape = 's32[2]{0}', space=sflag, size = 0x8, scoped, tag = 'scoped memory for tpu_custom_call.1']
    #allocation6 [shape = 'u8[2048]{0}', space=vmem, size = 0x800, scoped, tag = 'input window, operand 1']
    #allocation7 [shape = 's32[2]{0}', space=sflag, size = 0x8, scoped, tag = 'scoped memory for tpu_custom_call.1']
    #allocation8 [shape = 'u8[1024]{0}', space=vmem, size = 0x400, scoped, tag = 'input window, operand 2']
    #allocation9 [shape = 'u8[32768]{0}', space=vmem, size = 0x8000, scoped, tag = 'output window, operand 0']
    %8 = vsyncpa [#allocation4], 0
    %9 = vsyncpa [#allocation7], 0
    %s10 = scalar_lea.sflag [#allocation7], 1
    %11 = vsyncpa %s10, 0
    %12 = vsyncpa [#allocation5], 0
    %s13 = scalar_lea.sflag [#allocation5], 1
    %14 = vsyncpa %s13, 0
    loop: start=0, step=1, limit=4
    $region2: #{tpu_custom_call.1} parent=1 // loop_pre_header
      _
    $region3: #{tpu_custom_call.1} parent=1 // loop_header
      %s16 = sphi 0, %s20
      %p17 = scmp.ge.s32.totalorder %s16, 4
      %s23 = sphi 0, %s35
      %s24 = sphi 0, %s31
      %s25 = sphi 0, %s23
      %s26 = sphi 0, %s24
      %s27 = sphi 0, %s25
      %s28 = sphi 0, %s26
      %s36 = sphi 0, %s36
      %s38 = sphi 0, %s36
      %s39 = sphi 0, %s38
      %s53 = sphi 0, %s39
      %s61 = sphi 0, %s63
      %s64 = sphi 0, %s61
      %s65 = sphi 0, %s64
      %s81 = sphi 0, %s65
      %s93 = sphi 0, %s95
      %s96 = sphi 0, %s93
      %s97 = sphi 0, %s96
      %s113 = sphi 0, %s97
      %s121 = sphi 0, %s123
      %s124 = sphi 0, %s121
      %s125 = sphi 0, %s124
      %s141 = sphi 0, %s125
    $region4: #{tpu_custom_call.1} parent=1 // loop_header_branch
      %19 = sbr.rel (%p17) target = $region8
    $region5: #{tpu_custom_call.1} parent=1 // loop_body
      %s21 = ssub.s32 %s16, 1
      %s22 = ssub.s32 %s16, 2
      %s29 = sadd.s32 1, %s24
      %p30 = scmp.ge.s32.totalorder %s29, 1
      %s31 = scalar_select %p30, 0, %s29
      %s32 = sadd.s32 1, %s23
      %s33 = scalar_select %p30, %s32, %s23
      %p34 = scmp.ge.s32.totalorder %s33, 2
      %s35 = scalar_select %p34, 0, %s33
      %s37 = sadd.s32 %s36, 1
      %p40 = scmp.eq.s32.totalorder %s16, 1
      %p41 = scmp.ne.s32.totalorder %s36, %s38
      %p42 = scmp.eq.s32.totalorder %s16, 0
      %p43 = por %p41, %p42
      %p44 = scmp.ne.s32.totalorder %s36, %s38
      %p45 = scmp.eq.s32.totalorder %s21, 1
      %p46 = por %p44, %p45
      %p47 = scmp.ne.s32.totalorder %s38, %s39
      %p48 = scmp.eq.s32.totalorder %s21, 0
      %p49 = por %p47, %p48
      %p50 = scmp.ne.s32.totalorder %s38, %s39
      %p51 = scmp.eq.s32.totalorder %s22, 1
      %p52 = por %p50, %p51
      %p54 = scmp.ne.s32.totalorder %s39, %s53
      %p55 = scmp.eq.s32.totalorder %s22, 0
      %p56 = por %p54, %p55
      %s57 = ssub.s32 %s23, %s35
      %s58 = ssub.s32 %s24, %s31
      %s59 = sor.u32 %s57, %s58
      %p60 = scmp.eq.s32.totalorder %s59, 0
      %s62 = sadd.s32 %s61, 1
      %s63 = scalar_select %p60, %s61, %s62
      %p66 = pneg %p60
      %p67 = scmp.eq.s32.totalorder %s16, 1
      %p68 = por %p66, %p67
      %p69 = scmp.ne.s32.totalorder %s61, %s64
      %p70 = scmp.eq.s32.totalorder %s16, 0
      %p71 = por %p69, %p70
      %p72 = scmp.ne.s32.totalorder %s61, %s64
      %p73 = scmp.eq.s32.totalorder %s21, 1
      %p74 = por %p72, %p73
      %p75 = scmp.ne.s32.totalorder %s64, %s65
      %p76 = scmp.eq.s32.totalorder %s21, 0
      %p77 = por %p75, %p76
      %p78 = scmp.ne.s32.totalorder %s64, %s65
      %p79 = scmp.eq.s32.totalorder %s22, 1
      %p80 = por %p78, %p79
      %p82 = scmp.ne.s32.totalorder %s65, %s81
      %p83 = scmp.eq.s32.totalorder %s22, 0
      %p84 = por %p82, %p83
      %s85 = sadd.s32 %s24, 1
      %s86 = smul.u32 %s85, 2
      %s87 = sadd.s32 %s31, 1
      %s88 = smul.u32 %s87, 2
      %s89 = ssub.s32 %s23, %s35
      %s90 = ssub.s32 %s86, %s88
      %s91 = sor.u32 %s89, %s90
      %p92 = scmp.eq.s32.totalorder %s91, 0
      %s94 = sadd.s32 %s93, 1
      %s95 = scalar_select %p92, %s93, %s94
      %p98 = pneg %p92
      %p99 = scmp.eq.s32.totalorder %s16, 1
      %p100 = por %p98, %p99
      %p101 = scmp.ne.s32.totalorder %s93, %s96
      %p102 = scmp.eq.s32.totalorder %s16, 0
      %p103 = por %p101, %p102
      %p104 = scmp.ne.s32.totalorder %s93, %s96
      %p105 = scmp.eq.s32.totalorder %s21, 1
      %p106 = por %p104, %p105
      %p107 = scmp.ne.s32.totalorder %s96, %s97
      %p108 = scmp.eq.s32.totalorder %s21, 0
      %p109 = por %p107, %p108
      %p110 = scmp.ne.s32.totalorder %s96, %s97
      %p111 = scmp.eq.s32.totalorder %s22, 1
      %p112 = por %p110, %p111
      %p114 = scmp.ne.s32.totalorder %s97, %s113
      %p115 = scmp.eq.s32.totalorder %s22, 0
      %p116 = por %p114, %p115
      %s117 = ssub.s32 %s23, %s35
      %s118 = ssub.s32 %s24, %s31
      %s119 = sor.u32 %s117, %s118
      %p120 = scmp.eq.s32.totalorder %s119, 0
      %s122 = sadd.s32 %s121, 1
      %s123 = scalar_select %p120, %s121, %s122
      %p126 = pneg %p120
      %p127 = scmp.eq.s32.totalorder %s16, 1
      %p128 = por %p126, %p127
      %p129 = scmp.ne.s32.totalorder %s121, %s124
      %p130 = scmp.eq.s32.totalorder %s16, 0
      %p131 = por %p129, %p130
      %p132 = scmp.ne.s32.totalorder %s121, %s124
      %p133 = scmp.eq.s32.totalorder %s21, 1
      %p134 = por %p132, %p133
      %p135 = scmp.ne.s32.totalorder %s124, %s125
      %p136 = scmp.eq.s32.totalorder %s21, 0
      %p137 = por %p135, %p136
      %p138 = scmp.ne.s32.totalorder %s124, %s125
      %p139 = scmp.eq.s32.totalorder %s22, 1
      %p140 = por %p138, %p139
      %p142 = scmp.ne.s32.totalorder %s125, %s141
      %p143 = scmp.eq.s32.totalorder %s22, 0
      %p144 = por %p142, %p143
      %p145 = scmp.le.s32.totalorder 1, %s16
      %p146 = scmp.lt.s32.totalorder %s16, 3
      %p147 = pnand %p145, %p146
      %p148 = pneg %p147
      // Predicated region
      $region9: #{tpu_custom_call.1} parent=5 // pred_check
        _
      $region10: #{tpu_custom_call.1} parent=5 // pred_check_branch
        %150 = sbr.rel (%p147) target = $region12
      $region11: #{tpu_custom_call.1} parent=5 // pred_region
        %s151 = ssub.s32 %s16, 1
        // Predicated region
        $region13: #{tpu_custom_call.1} parent=11 // pred_check
          %p152 = pneg %p49
        $region14: #{tpu_custom_call.1} parent=11 // pred_check_branch
          %154 = sbr.rel (%p152) target = $region16
        $region15: #{tpu_custom_call.1} parent=11 // pred_region
          %s156 = ssub.s32 256, 256
          %157 = vsyncadd [#allocation4], %s156
          %s158 = sshll.u32 [#allocation3], 4
          %s159 = int_to_ptr.vmem [resolvable:$true] %s158
          %164 = dma.hbm_to_vmem [thread:$0]  %s0, 256, %s159, [#allocation4], 128, 128, 8
        $region16: #{tpu_custom_call.1} parent=11 // pred_fallthru
          _
      $region12: #{tpu_custom_call.1} parent=5 // pred_fallthru
        _
      %p165 = scmp.lt.s32.totalorder %s16, 2
      // Predicated region
      $region17: #{tpu_custom_call.1} parent=5 // pred_check
        %p166 = pneg %p165
      $region18: #{tpu_custom_call.1} parent=5 // pred_check_branch
        %168 = sbr.rel (%p166) target = $region20
      $region19: #{tpu_custom_call.1} parent=5 // pred_region
        // Predicated region
        $region21: #{tpu_custom_call.1} parent=19 // pred_check
          %p169 = pneg %p71
        $region22: #{tpu_custom_call.1} parent=19 // pred_check_branch
          %171 = sbr.rel (%p169) target = $region24
        $region23: #{tpu_custom_call.1} parent=19 // pred_region
          %s172 = sand.u32 %s16, 1
          %s173 = scalar_lea.sflag [#allocation7], %s172
          %s174 = sand.u32 %s61, 1
          %s175 = smul.addr %s174, 2
          %s176 = scalar_lea.vmem [#allocation6], %s175
          %s177 = smul.u32 2, %s24
          %s178 = ssub.s32 3, %s177
          %p179 = scmp.lt.s32.totalorder %s178, 2
          %s180 = scalar_select %p179, %s178, 2
          %s181 = smul.u32 16, %s180
          %s183 = ssub.s32 32, %s181
          %184 = vsyncadd %s173, %s183
          %p185 = scmp.ne.s32.totalorder 0, %s181
          %s186 = smul.addr %s23, 3
          %s187 = sadd.s32 %s177, %s186
          %s188 = smul.addr %s187, 16
          %s189 = scalar_lea.hbm %s1, %s188
          %s190 = sshll.u32 %s180, 4
          %s191 = sshll.u32 %s176, 4
          %s192 = int_to_ptr.vmem [resolvable:$true] %s191
          %194 = dma.hbm_to_vmem [thread:$0]  (%p185), %s189, %s190, %s192, %s173
        $region24: #{tpu_custom_call.1} parent=19 // pred_fallthru
          _
        // Predicated region
        $region25: #{tpu_custom_call.1} parent=19 // pred_check
          %p195 = pneg %p103
        $region26: #{tpu_custom_call.1} parent=19 // pred_check_branch
          %197 = sbr.rel (%p195) target = $region28
        $region27: #{tpu_custom_call.1} parent=19 // pred_region
          %s198 = sand.u32 %s16, 1
          %s199 = scalar_lea.sflag [#allocation7], %s198
          %s200 = sand.u32 %s93, 1
          %s201 = scalar_lea.vmem [#allocation8], %s200
          %s202 = sadd.s32 %s24, 1
          %s203 = smul.u32 %s202, 2
          %s205 = ssub.s32 16, 16
          %206 = vsyncadd %s199, %s205
          %s207 = smul.addr %s23, 3
          %s208 = sadd.s32 %s203, %s207
          %s209 = smul.addr %s208, 16
          %s210 = scalar_lea.hbm %s2, %s209
          %s212 = sshll.u32 %s201, 4
          %s213 = int_to_ptr.vmem [resolvable:$true] %s212
          %215 = dma.hbm_to_vmem [thread:$0]  %s210, 16, %s213, %s199
        $region28: #{tpu_custom_call.1} parent=19 // pred_fallthru
          _
      $region20: #{tpu_custom_call.1} parent=5 // pred_fallthru
        _
      %p216 = scmp.le.s32.totalorder 1, %s16
      %p217 = scmp.lt.s32.totalorder %s16, 3
      %p218 = pnand %p216, %p217
      %p219 = pneg %p218
      // Predicated region
      $region29: #{tpu_custom_call.1} parent=5 // pred_check
        _
      $region30: #{tpu_custom_call.1} parent=5 // pred_check_branch
        %221 = sbr.rel (%p218) target = $region32
      $region31: #{tpu_custom_call.1} parent=5 // pred_region
        %s222 = ssub.s32 %s16, 1
        // Predicated region
        $region33: #{tpu_custom_call.1} parent=31 // pred_check
          %p223 = pneg %p49
        $region34: #{tpu_custom_call.1} parent=31 // pred_check_branch
          %225 = sbr.rel (%p223) target = $region36
        $region35: #{tpu_custom_call.1} parent=31 // pred_region
          %226 = dma.done [#allocation4], 256
        $region36: #{tpu_custom_call.1} parent=31 // pred_fallthru
          _
        %s227 = sand.u32 %s21, 1
        %s228 = scalar_lea.sflag [#allocation7], %s227
        %s229 = sand.u32 %s64, 1
        %s230 = smul.addr %s229, 2
        %s231 = scalar_lea.vmem [#allocation6], %s230
        // Predicated region
        $region37: #{tpu_custom_call.1} parent=31 // pred_check
          %p232 = pneg %p77
        $region38: #{tpu_custom_call.1} parent=31 // pred_check_branch
          %234 = sbr.rel (%p232) target = $region40
        $region39: #{tpu_custom_call.1} parent=31 // pred_region
          %235 = dma.done %s228, 32
        $region40: #{tpu_custom_call.1} parent=31 // pred_fallthru
          _
        %s236 = sand.u32 %s21, 1
        %s237 = scalar_lea.sflag [#allocation7], %s236
        %s238 = sand.u32 %s96, 1
        %s239 = scalar_lea.vmem [#allocation8], %s238
        // Predicated region
        $region41: #{tpu_custom_call.1} parent=31 // pred_check
          %p240 = pneg %p109
        $region42: #{tpu_custom_call.1} parent=31 // pred_check_branch
          %242 = sbr.rel (%p240) target = $region44
        $region43: #{tpu_custom_call.1} parent=31 // pred_region
          %243 = dma.done %s237, 16
        $region44: #{tpu_custom_call.1} parent=31 // pred_fallthru
          _
        %p244 = pneg %p49
        %p245 = pneg %p46
        %s246 = sand.u32 %s21, 1
        %s247 = scalar_lea.sflag [#allocation7], %s246
        %s248 = sand.u32 %s64, 1
        %s249 = smul.addr %s248, 2
        %s250 = scalar_lea.vmem [#allocation6], %s249
        %p251 = pneg %p77
        %p252 = pneg %p74
        %s253 = sand.u32 %s21, 1
        %s254 = scalar_lea.sflag [#allocation7], %s253
        %s255 = sand.u32 %s96, 1
        %s256 = scalar_lea.vmem [#allocation8], %s255
        %p257 = pneg %p109
        %p258 = pneg %p106
        %p259 = pneg %p137
        %p260 = pneg %p134
        %s261 = sand.u32 %s124, 1
        %s262 = scalar_lea.sflag [#allocation5], %s261
        %s263 = sand.u32 %s124, 1
        %s264 = smul.addr %s263, 32
        %s265 = scalar_lea.vmem [#allocation9], %s264
        %s266 = smul.u32 2, %s26
        %s267 = ssub.s32 3, %s266
        %p268 = scmp.lt.s32.totalorder %s267, 2
        %s269 = scalar_select %p268, %s267, 2
        %s270 = smul.u32 16, %s269
        %s271 = sadd.s32 %s26, 1
        %s272 = smul.u32 %s271, 2
        %s273 = smul.u32 2, %s26
        %v274 = vld [vmem:[%s231] sm:$0x3]
        %v275 = vld [vmem:[%s239] sm:$0x1]
        %v277 = vlaneseq
        %v278 = vshrl.u32 %v277, 7
        %v279 = vsub.s32 0, %v278
        %v280 = vrot.slane %v274, %v279
        %v281 = vlaneseq
        %v282 = vshrl.u32 %v281, 7
        %v283 = vsub.s32 1, %v282
        %v284 = vrot.slane %v274, %v283
        %v288 = vrot.slane %v280, 7
        %v289 = vrot.slane %v284, 7
        %v290 = vrot.slane %v275, 7
        %291 = vrot.lane.b32.xlu0 %v288, 127
        %v292 = vpop.permute.xlu0 %291
        %293 = vrot.lane.b32.xlu0 %v289, 127
        %v294 = vpop.permute.xlu0 %293
        %295 = vrot.lane.b32.xlu0 %v290, 127
        %v296 = vpop.permute.xlu0 %295
        %vm297 = vcmask 1039360
        %v298 = vsel %vm297, %v292, %v294
        %v299 = vsel %vm297, %v294, %v296
        %v302 = vrot.slane %v280, 6
        %v303 = vrot.slane %v284, 6
        %v304 = vrot.slane %v275, 6
        %305 = vrot.lane.b32.xlu0 %v302, 126
        %v306 = vpop.permute.xlu0 %305
        %307 = vrot.lane.b32.xlu0 %v303, 126
        %v308 = vpop.permute.xlu0 %307
        %309 = vrot.lane.b32.xlu0 %v304, 126
        %v310 = vpop.permute.xlu0 %309
        %vm311 = vcmask 1031168
        %v312 = vsel %vm311, %v306, %v308
        %v313 = vsel %vm311, %v308, %v310
        %v316 = vrot.slane %v280, 5
        %v317 = vrot.slane %v284, 5
        %v318 = vrot.slane %v275, 5
        %319 = vrot.lane.b32.xlu0 %v316, 125
        %v320 = vpop.permute.xlu0 %319
        %321 = vrot.lane.b32.xlu0 %v317, 125
        %v322 = vpop.permute.xlu0 %321
        %323 = vrot.lane.b32.xlu0 %v318, 125
        %v324 = vpop.permute.xlu0 %323
        %vm325 = vcmask 1022976
        %v326 = vsel %vm325, %v320, %v322
        %v327 = vsel %vm325, %v322, %v324
        %v330 = vrot.slane %v280, 4
        %v331 = vrot.slane %v284, 4
        %v332 = vrot.slane %v275, 4
        %333 = vrot.lane.b32.xlu0 %v330, 124
        %v334 = vpop.permute.xlu0 %333
        %335 = vrot.lane.b32.xlu0 %v331, 124
        %v336 = vpop.permute.xlu0 %335
        %337 = vrot.lane.b32.xlu0 %v332, 124
        %v338 = vpop.permute.xlu0 %337
        %vm339 = vcmask 1014784
        %v340 = vsel %vm339, %v334, %v336
        %v341 = vsel %vm339, %v336, %v338
        %v344 = vrot.slane %v280, 3
        %v345 = vrot.slane %v284, 3
        %v346 = vrot.slane %v275, 3
        %347 = vrot.lane.b32.xlu0 %v344, 123
        %v348 = vpop.permute.xlu0 %347
        %349 = vrot.lane.b32.xlu0 %v345, 123
        %v350 = vpop.permute.xlu0 %349
        %351 = vrot.lane.b32.xlu0 %v346, 123
        %v352 = vpop.permute.xlu0 %351
        %vm353 = vcmask 1006592
        %v354 = vsel %vm353, %v348, %v350
        %v355 = vsel %vm353, %v350, %v352
        %v358 = vrot.slane %v280, 2
        %v359 = vrot.slane %v284, 2
        %v360 = vrot.slane %v275, 2
        %361 = vrot.lane.b32.xlu0 %v358, 122
        %v362 = vpop.permute.xlu0 %361
        %363 = vrot.lane.b32.xlu0 %v359, 122
        %v364 = vpop.permute.xlu0 %363
        %365 = vrot.lane.b32.xlu0 %v360, 122
        %v366 = vpop.permute.xlu0 %365
        %vm367 = vcmask 998400
        %v368 = vsel %vm367, %v362, %v364
        %v369 = vsel %vm367, %v364, %v366
        %v372 = vrot.slane %v280, 1
        %v373 = vrot.slane %v284, 1
        %v374 = vrot.slane %v275, 1
        %375 = vrot.lane.b32.xlu0 %v372, 121
        %v376 = vpop.permute.xlu0 %375
        %377 = vrot.lane.b32.xlu0 %v373, 121
        %v378 = vpop.permute.xlu0 %377
        %379 = vrot.lane.b32.xlu0 %v374, 121
        %v380 = vpop.permute.xlu0 %379
        %vm381 = vcmask 990208
        %v382 = vsel %vm381, %v376, %v378
        %v383 = vsel %vm381, %v378, %v380
        %vm386 = vcmask 1040384
        %v387 = vsel %vm386, %v280, %v298
        %v388 = vsel %vm386, %v284, %v299
        %vm389 = vcmask 1041408
        %v390 = vsel %vm389, %v387, %v312
        %v391 = vsel %vm389, %v388, %v313
        %vm392 = vcmask 1042432
        %v393 = vsel %vm392, %v390, %v326
        %v394 = vsel %vm392, %v391, %v327
        %vm395 = vcmask 1043456
        %v396 = vsel %vm395, %v393, %v340
        %v397 = vsel %vm395, %v394, %v341
        %vm398 = vcmask 1044480
        %v399 = vsel %vm398, %v396, %v354
        %v400 = vsel %vm398, %v397, %v355
        %vm401 = vcmask 1045504
        %v402 = vsel %vm401, %v399, %v368
        %v403 = vsel %vm401, %v400, %v369
        %vm404 = vcmask 1046528
        %v405 = vsel %vm404, %v402, %v382
        %v406 = vsel %vm404, %v403, %v383
        %407 = vst [vmem:[#allocation2] sm:$0xff] %v405
        %408 = vst [vmem:[#allocation2 + $0x8] sm:$0xff] %v406
        %v416 = vsel %vm386, %v275, %v296
        %v417 = vsel %vm389, %v416, %v310
        %v418 = vsel %vm392, %v417, %v324
        %v419 = vsel %vm395, %v418, %v338
        %v420 = vsel %vm398, %v419, %v352
        %v421 = vsel %vm401, %v420, %v366
        %v422 = vsel %vm404, %v421, %v380
        %426 = vrot.lane.b32.xlu0 %v405, 120
        %v427 = vpop.permute.xlu0 %426
        %428 = vrot.lane.b32.xlu0 %v406, 120
        %v429 = vpop.permute.xlu0 %428
        %430 = vrot.lane.b32.xlu0 %v422, 120
        %v431 = vpop.permute.xlu0 %430
        %vm432 = vcmask 982016
        %v433 = vsel %vm432, %v427, %v429
        %v434 = vsel %vm432, %v429, %v431
        %437 = vst [vmem:[#allocation2 + $0x10] sm:$0xff] %v433
        %438 = vst [vmem:[#allocation2 + $0x18] sm:$0xff] %v434
        %439 = vrot.lane.b32.xlu0 %v405, 112
        %v440 = vpop.permute.xlu0 %439
        %441 = vrot.lane.b32.xlu0 %v406, 112
        %v442 = vpop.permute.xlu0 %441
        %443 = vrot.lane.b32.xlu0 %v422, 112
        %v444 = vpop.permute.xlu0 %443
        %vm445 = vcmask 916480
        %v446 = vsel %vm445, %v440, %v442
        %v447 = vsel %vm445, %v442, %v444
        %450 = vst [vmem:[#allocation2 + $0x20] sm:$0xff] %v446
        %451 = vst [vmem:[#allocation2 + $0x28] sm:$0xff] %v447
        %452 = vrot.lane.b32.xlu0 %v405, 104
        %v453 = vpop.permute.xlu0 %452
        %454 = vrot.lane.b32.xlu0 %v406, 104
        %v455 = vpop.permute.xlu0 %454
        %456 = vrot.lane.b32.xlu0 %v422, 104
        %v457 = vpop.permute.xlu0 %456
        %vm458 = vcmask 850944
        %v459 = vsel %vm458, %v453, %v455
        %v460 = vsel %vm458, %v455, %v457
        %463 = vst [vmem:[#allocation2 + $0x30] sm:$0xff] %v459
        %464 = vst [vmem:[#allocation2 + $0x38] sm:$0xff] %v460
        %v465 = vld [vmem:[#allocation3] sm:$0xff]
        %v466 = vld [vmem:[#allocation3 + $0x8] sm:$0xff]
        %v467 = vld [vmem:[#allocation2] sm:$0xff]
        %v468 = vld [vmem:[#allocation2 + $0x8] sm:$0xff]
        %v469 = vld [vmem:[#allocation2 + $0x10] sm:$0xff]
        %v470 = vld [vmem:[#allocation2 + $0x18] sm:$0xff]
        %v471 = vld [vmem:[#allocation2 + $0x20] sm:$0xff]
        %v472 = vld [vmem:[#allocation2 + $0x28] sm:$0xff]
        %v473 = vld [vmem:[#allocation2 + $0x30] sm:$0xff]
        %v474 = vld [vmem:[#allocation2 + $0x38] sm:$0xff]
        %vm475 = vcmask 261120
        %v477 = vsel %vm475, %v465, 0
        %v480 = vsel %vm475, %v466, 0
        %482 = vmatprep.subr.mxu0 0.0
        %483 = vmatpush1.msra.mxu0 0.0
        %484 = vmatprep.subr.mxu0 0.0
        %485 = vmatpush1.msra.mxu0 0.0
        %486 = vmatprep.subr.mxu0 0.0
        %487 = vmatpush1.msra.mxu0 0.0
        %488 = vmatprep.subr.mxu0 0.0
        %489 = vmatpush1.msra.mxu0 0.0
        %490 = vmatprep.subr.mxu0 0.0
        %491 = vmatpush1.msra.mxu0 0.0
        %492 = vmatprep.subr.mxu0 0.0
        %493 = vmatpush1.msra.mxu0 0.0
        %494 = vmatprep.subr.mxu0 0.0
        %495 = vmatpush1.msra.mxu0 0.0
        %496 = vmatprep.subr.mxu0 0.0
        %497 = vmatpush1.msra.mxu0 0.0
        %498 = vmatprep.subr.mxu0 0.0
        %499 = vmatpush1.msra.mxu0 0.0
        %500 = vmatprep.subr.mxu0 0.0
        %501 = vmatpush1.msra.mxu0 0.0
        %502 = vmatprep.subr.mxu0 0.0
        %503 = vmatpush1.msra.mxu0 0.0
        %504 = vmatprep.subr.mxu0 0.0
        %505 = vmatpush1.msra.mxu0 0.0
        %506 = vmatprep.subr.mxu0 %v474
        %507 = vmatpush1.msra.mxu0 %v473
        %508 = vmatprep.subr.mxu0 %v472
        %509 = vmatpush1.msra.mxu0 %v471
        %510 = vmatprep.subr.mxu0 %v470
        %511 = vmatpush1.msra.mxu0 %v469
        %512 = vmatprep.subr.mxu0 %v468
        %513 = vmatpush1.msra.mxu0 %v467
        %514 = vmatprep.subr.mxu0 0.0
        %515 = vmatpush2.msra.mxu0 0.0
        %516 = vmatprep.subr.mxu0 0.0
        %517 = vmatpush2.msra.mxu0 0.0
        %518 = vmatprep.subr.mxu0 0.0
        %519 = vmatpush2.msra.mxu0 0.0
        %520 = vmatprep.subr.mxu0 0.0
        %521 = vmatpush2.msra.mxu0 0.0
        %522 = vmatprep.subr.mxu0 0.0
        %523 = vmatpush2.msra.mxu0 0.0
        %524 = vmatprep.subr.mxu0 0.0
        %525 = vmatpush2.msra.mxu0 0.0
        %526 = vmatprep.subr.mxu0 0.0
        %527 = vmatpush2.msra.mxu0 0.0
        %528 = vmatprep.subr.mxu0 0.0
        %529 = vmatpush2.msra.mxu0 0.0
        %530 = vmatprep.subr.mxu0 0.0
        %531 = vmatpush2.msra.mxu0 0.0
        %532 = vmatprep.subr.mxu0 0.0
        %533 = vmatpush2.msra.mxu0 0.0
        %534 = vmatprep.subr.mxu0 0.0
        %535 = vmatpush2.msra.mxu0 0.0
        %536 = vmatprep.subr.mxu0 0.0
        %537 = vmatpush2.msra.mxu0 0.0
        %538 = vmatprep.subr.mxu0 0.0
        %539 = vmatpush2.msra.mxu0 0.0
        %540 = vmatprep.subr.mxu0 0.0
        %541 = vmatpush2.msra.mxu0 0.0
        %542 = vmatprep.subr.mxu0 0.0
        %543 = vmatpush2.msra.mxu0 0.0
        %544 = vmatprep.subr.mxu0 0.0
        %545 = vmatpush2.msra.mxu0 0.0
        %546 = vmatprep.mubr.f32.mxu0 0.0
        %547 = vmatmul.mubr.f32.gmra.mxu0 %v477
        %v548 = vpop.f32.mrf.mxu0
        %v549 = vadd.f32 0.0, %v548
        %v550 = vpop.f32.mrf.mxu0
        %v551 = vadd.f32 0.0, %v550
        %552 = vmatprep.mubr.f32.mxu0 0.0
        %553 = vmatmul.mubr.f32.gmra.mxu0 %v480
        %v554 = vpop.f32.mrf.mxu0
        %v555 = vadd.f32 0.0, %v554
        %v556 = vpop.f32.mrf.mxu0
        %v557 = vadd.f32 0.0, %v556
        %558 = vdwg.mxu0
        %559 = vst [vmem:[%s265] sm:$0xff] %v549
        %560 = vst [vmem:[%s265 + $0x8] sm:$0xff] %v551
        %561 = vst [vmem:[%s265 + $0x10] sm:$0xff] %v555
        %562 = vst [vmem:[%s265 + $0x18] sm:$0xff] %v557
        %s563 = sand.u32 %s124, 1
        %s564 = scalar_lea.sflag [#allocation5], %s563
        %s565 = sand.u32 %s124, 1
        %s566 = smul.addr %s565, 32
        %s567 = scalar_lea.vmem [#allocation9], %s566
        // Predicated region
        $region45: #{tpu_custom_call.1} parent=31 // pred_check
          %p568 = pneg %p134
        $region46: #{tpu_custom_call.1} parent=31 // pred_check_branch
          %570 = sbr.rel (%p568) target = $region48
        $region47: #{tpu_custom_call.1} parent=31 // pred_region
          %s571 = smul.u32 2, %s26
          %s573 = ssub.s32 512, 512
          %574 = vsyncadd %s564, %s573
          %s575 = smul.addr %s25, 4
          %s576 = sadd.s32 %s571, %s575
          %s577 = smul.addr %s576, 128
          %s578 = scalar_lea.hbm %s3, %s577
          %s579 = sshll.u32 %s567, 4
          %s580 = int_to_ptr.vmem [resolvable:$true] %s579
          %585 = dma.vmem_to_hbm [thread:$0]  %s580, 512, %s578, %s564, 256, 256, 16
        $region48: #{tpu_custom_call.1} parent=31 // pred_fallthru
          _
      $region32: #{tpu_custom_call.1} parent=5 // pred_fallthru
        _
      %p586 = scmp.le.s32.totalorder 2, %s16
      // Predicated region
      $region49: #{tpu_custom_call.1} parent=5 // pred_check
        %p587 = pneg %p586
      $region50: #{tpu_custom_call.1} parent=5 // pred_check_branch
        %589 = sbr.rel (%p587) target = $region52
      $region51: #{tpu_custom_call.1} parent=5 // pred_region
        %s590 = ssub.s32 %s16, 2
        // Predicated region
        $region53: #{tpu_custom_call.1} parent=51 // pred_check
          %p591 = pneg %p140
        $region54: #{tpu_custom_call.1} parent=51 // pred_check_branch
          %593 = sbr.rel (%p591) target = $region56
        $region55: #{tpu_custom_call.1} parent=51 // pred_region
          %s594 = sand.u32 %s125, 1
          %s595 = scalar_lea.sflag [#allocation5], %s594
          %s596 = sand.u32 %s125, 1
          %s597 = smul.addr %s596, 32
          %s598 = scalar_lea.vmem [#allocation9], %s597
          %599 = dma.done %s595, 512
        $region56: #{tpu_custom_call.1} parent=51 // pred_fallthru
          _
      $region52: #{tpu_custom_call.1} parent=5 // pred_fallthru
        _
    $region6: #{tpu_custom_call.1} parent=1 // loop_footer
      %s20 = sadd.s32 1, %s16
    $region7: #{tpu_custom_call.1} parent=1 // loop_footer_branch
      %15 = sbr.rel target = $region3
    $region8: #{tpu_custom_call.1} parent=1 // loop_exit
      _
    %600 = vsyncpa [#allocation4], 1
    %s601 = scalar_lea.sflag [#allocation4], 1
    %602 = vsyncpa %s601, 1
    %603 = vsyncpa [#allocation7], 1
    %s604 = scalar_lea.sflag [#allocation7], 1
    %605 = vsyncpa %s604, 1
    %606 = vsyncpa [#allocation5], 1
    %s607 = scalar_lea.sflag [#allocation5], 1
    %608 = vsyncpa %s607, 1

</llo_original>
